<compile_context>
chip_gen: v7x
topology: tpu7x:2x2x1
jax: 0.10.0
libtpu: 0.0.40
codegen_flags: <defaults>
</compile_context>

<pallas_src>
import jax
import jax.numpy as jnp
from jax.experimental import pallas as pl
from jax.experimental.pallas import tpu as pltpu


def linear_nobias_kernel(w_ref, xt_ref, o_ref):
    # w_ref:  (1, 2)      in SMEM  -- the nn.Linear weight (out, in)
    # xt_ref: (2, TILE_N) in VMEM  -- input, batch on the lane axis
    # o_ref:  (1, TILE_N) in VMEM  -- output, batch on the lane axis
    w0 = w_ref[0, 0]
    w1 = w_ref[0, 1]
    # Pure VPU work: out_row = w0 * x_row0 + w1 * x_row1
    o_ref[...] = w0 * xt_ref[0:1, :] + w1 * xt_ref[1:2, :]


def _round_up(x, m):
    return ((x + m - 1) // m) * m


def shallow_net_forward(x, weight, *, tile_n=1024):
    """Pallas equivalent of ShallowNet.forward (fc1(X), no bias).

    x:      (N, in_features=2)  float32
    weight: (out_features=1, in_features=2) float32 (PyTorch nn.Linear layout)
    returns (N, out_features=1) float32
    """
    n, k = x.shape
    m, kw = weight.shape
    assert k == 2 and kw == 2 and m == 1, "ShallowNet is Linear(2, 1, bias=False)"

    # Lane-dense layout: batch on the 128-lane axis.
    xt = x.T  # (2, N)

    # Pad N up to a lane-aligned, tile-divisible size.
    n_pad = _round_up(max(n, 128), 128)
    if n_pad <= tile_n:
        tile = n_pad
    else:
        tile = tile_n
        n_pad = _round_up(n_pad, tile)
    if n_pad != n:
        xt = jnp.pad(xt, ((0, 0), (0, n_pad - n)))

    grid = (n_pad // tile,)

    out_t = pl.pallas_call(
        linear_nobias_kernel,
        out_shape=jax.ShapeDtypeStruct((m, n_pad), x.dtype),
        grid=grid,
        in_specs=[
            # Tiny weight lives in SMEM; read as scalars inside the kernel.
            pl.BlockSpec(memory_space=pltpu.MemorySpace.SMEM),
            # Input tile: (2, TILE_N), lane-dense, double-buffered by Pallas.
            pl.BlockSpec((k, tile), lambda i: (0, i)),
        ],
        out_specs=pl.BlockSpec((m, tile), lambda i: (0, i)),
        compiler_params=pltpu.CompilerParams(
            dimension_semantics=("parallel",),
        ),
    )(weight, xt)

    # Drop padding and restore PyTorch layout (N, out_features).
    return out_t[:, :n].T


if __name__ == "__main__":
    key = jax.random.PRNGKey(0)
    k_w, k_x1, k_x2 = jax.random.split(key, 3)

    in_features, out_features = 2, 1

    # Deterministic weight init matching nn.Linear's U(-1/sqrt(in), 1/sqrt(in)).
    bound = 1.0 / jnp.sqrt(jnp.float32(in_features))
    weight = jax.random.uniform(
        k_w, (out_features, in_features), dtype=jnp.float32,
        minval=-bound, maxval=bound,
    )

    # Small batch consistent with the module (batch=2, in_features=2).
    x_small = jax.random.normal(k_x1, (2, in_features), dtype=jnp.float32)
    out_small = jax.block_until_ready(shallow_net_forward(x_small, weight))
    ref_small = x_small @ weight.T
    assert out_small.shape == (2, out_features)
    assert jnp.allclose(out_small, ref_small, atol=1e-5, rtol=1e-5)

    # Larger batch to exercise padding, lane tiling and the multi-step grid.
    x_big = jax.random.normal(k_x2, (3000, in_features), dtype=jnp.float32)
    out_big = jax.block_until_ready(shallow_net_forward(x_big, weight, tile_n=1024))
    ref_big = x_big @ weight.T
    assert out_big.shape == (3000, out_features)
    assert jnp.allclose(out_big, ref_big, atol=1e-5, rtol=1e-5)

    print("KERNEL_OK")
</pallas_src>

<mosaic_0001>
module attributes {stable_mosaic.version = 11 : i64} {
  func.func @linear_nobias_kernel(%arg0: i32, %arg1: memref<1x2xf32, #tpu.memory_space<smem>>, %arg2: memref<2x128xf32, #tpu.memory_space<vmem>>, %arg3: memref<1x128xf32, #tpu.memory_space<vmem>>) attributes {dimension_semantics = [#tpu.dimension_semantics<parallel>], iteration_bounds = array<i64: 1>, scalar_prefetch = 0 : i64, scratch_operands = 0 : i64, tpu.core_type = #tpu.core_type<tc>, window_params = [{transform_indices = @transform_0, window_bounds = array<i64: 1, 2>}, {transform_indices = @transform_1, window_bounds = array<i64: 2, 128>}, {transform_indices = @transform_2, window_bounds = array<i64: 1, 128>}]} {
    %c0 = arith.constant 0 : index
    %c0_0 = arith.constant 0 : index
    %0 = memref.load %arg1[%c0, %c0_0] : memref<1x2xf32, #tpu.memory_space<smem>>
    %c0_1 = arith.constant 0 : index
    %c1 = arith.constant 1 : index
    %1 = memref.load %arg1[%c0_1, %c1] : memref<1x2xf32, #tpu.memory_space<smem>>
    %c0_2 = arith.constant 0 : index
    %c0_3 = arith.constant 0 : index
    %2 = vector.load %arg2[%c0_2, %c0_3] : memref<2x128xf32, #tpu.memory_space<vmem>>, vector<1x128xf32>
    %3 = vector.broadcast %0 : f32 to vector<1x128xf32>
    %4 = arith.mulf %3, %2 : vector<1x128xf32>
    %c1_4 = arith.constant 1 : index
    %c0_5 = arith.constant 0 : index
    %5 = vector.load %arg2[%c1_4, %c0_5] : memref<2x128xf32, #tpu.memory_space<vmem>>, vector<1x128xf32>
    %6 = vector.broadcast %1 : f32 to vector<1x128xf32>
    %7 = arith.mulf %6, %5 : vector<1x128xf32>
    %8 = arith.addf %4, %7 : vector<1x128xf32>
    %c0_6 = arith.constant 0 : index
    %c0_7 = arith.constant 0 : index
    %9 = vector.load %arg3[%c0_6, %c0_7] : memref<1x128xf32, #tpu.memory_space<vmem>>, vector<1x128xf32>
    tpu.vector_store %arg3[%c0_6, %c0_7], %8 {strides = array<i32>} : memref<1x128xf32, #tpu.memory_space<vmem>>, vector<1x128xf32>,
    return
  }
  func.func @transform_0(%arg0: i32) -> (i32, i32) {
    %c0_i32 = arith.constant 0 : i32
    %c0_i32_0 = arith.constant 0 : i32
    %c0_i32_1 = arith.constant 0 : i32
    return %c0_i32, %c0_i32_0 : i32, i32
  }
  func.func @transform_1(%arg0: i32) -> (i32, i32) {
    %c0_i32 = arith.constant 0 : i32
    %c0_i32_0 = arith.constant 0 : i32
    return %c0_i32, %arg0 : i32, i32
  }
  func.func @transform_2(%arg0: i32) -> (i32, i32) {
    %c0_i32 = arith.constant 0 : i32
    %c0_i32_0 = arith.constant 0 : i32
    return %c0_i32, %arg0 : i32, i32
  }
}

</mosaic_0001>

<llo_original>
// kernel: tpu_custom_call.1
$region0: #{tpu_custom_call.1}
  #allocation0 [shape = 'u32[]', space=smem, size = 0x4, offset = 0x4, fixed_abs, tag = 'smem constant byte address 0x4 - core index']
  #allocation1 [shape = 'u32[144,128]{1,0:T(1,128)}', space=vmem, size = 0x12000, scoped, tag = 'internal scratch']
  %s0 = inlined_call_operand.hbm [shape: f32[1,2], index: 0, kind: input, shape index: {}]
  %s1 = inlined_call_operand.vmem [shape: f32[2,128], index: 1, kind: input, shape index: {}]
  %s2 = inlined_call_operand.hbm [shape: f32[1,128], index: 2, kind: output, shape index: {}]
  %s3 = sld [smem:[#allocation0]]
  $region22: #{tpu_custom_call.1} parent=0
    _
  %s5 = ssub.s32 1, %s3
  %s6 = scalar_select 0, %s5, %s3
  $region1: #{tpu_custom_call.1} parent=0
    #allocation2 [shape = 'u8[512]{0}', space=smem, size = 0x200, scoped, tag = 'input window, operand 0, single buffered']
    #allocation3 [shape = 's32[1]{0}', space=sflag, size = 0x4, scoped, tag = 'scoped memory for tpu_custom_call.1']
    #allocation4 [shape = 's32[1]{0}', space=sflag, size = 0x4, scoped, tag = 'scoped memory for tpu_custom_call.1']
    #allocation5 [shape = 'u8[512]{0}', space=vmem, size = 0x400, scoped, tag = 'output window, operand 0, single buffered']
    %7 = vsyncpa [#allocation4], 0
    %8 = vsyncpa [#allocation3], 0
    // Predicated region
    $region2: #{tpu_custom_call.1} parent=1 // pred_check
      _
    $region3: #{tpu_custom_call.1} parent=1 // pred_check_branch
      %10 = sbr.rel (0) target = $region5
    $region4: #{tpu_custom_call.1} parent=1 // pred_region
      %s12 = ssub.s32 16, 16
      %13 = vsyncadd [#allocation4], %s12
      %16 = dma.hbm_to_smem %s0, 16, [#allocation2], [#allocation4]
    $region5: #{tpu_custom_call.1} parent=1 // pred_fallthru
      _
    // Predicated region
    $region6: #{tpu_custom_call.1} parent=1 // pred_check
      _
    $region7: #{tpu_custom_call.1} parent=1 // pred_check_branch
      %18 = sbr.rel (0) target = $region9
    $region8: #{tpu_custom_call.1} parent=1 // pred_region
      _
    $region9: #{tpu_custom_call.1} parent=1 // pred_fallthru
      _
    // Predicated region
    $region10: #{tpu_custom_call.1} parent=1 // pred_check
      _
    $region11: #{tpu_custom_call.1} parent=1 // pred_check_branch
      %20 = sbr.rel (0) target = $region13
    $region12: #{tpu_custom_call.1} parent=1 // pred_region
      %21 = dma.done [#allocation4], 16
    $region13: #{tpu_custom_call.1} parent=1 // pred_fallthru
      _
    %22 = sfence
    %s23 = sld [smem:[#allocation2]]
    %s24 = sld [smem:[#allocation2 + $0x1]]
    %v25 = vld [vmem:[%s1] sm:$0x1]
    %v26 = vstv %s23
    %v27 = vmul.f32 %v26, %v25
    %v28 = vld [vmem:[%s1 + $0x1] sm:$0x1]
    %v29 = vstv %s24
    %v30 = vmul.f32 %v29, %v28
    %v31 = vadd.f32 %v27, %v30
    %32 = vst [vmem:[#allocation5] sm:$0x1] %v31
    // Predicated region
    $region14: #{tpu_custom_call.1} parent=1 // pred_check
      _
    $region15: #{tpu_custom_call.1} parent=1 // pred_check_branch
      %34 = sbr.rel (0) target = $region17
    $region16: #{tpu_custom_call.1} parent=1 // pred_region
      %s36 = ssub.s32 16, 16
      %37 = vsyncadd [#allocation3], %s36
      %s39 = sshll.u32 [#allocation5], 4
      %s40 = int_to_ptr.vmem [resolvable:$true] %s39
      %42 = dma.vmem_to_hbm [thread:$0]  %s40, 16, %s2, [#allocation3]
    $region17: #{tpu_custom_call.1} parent=1 // pred_fallthru
      _
    // Predicated region
    $region18: #{tpu_custom_call.1} parent=1 // pred_check
      _
    $region19: #{tpu_custom_call.1} parent=1 // pred_check_branch
      %44 = sbr.rel (0) target = $region21
    $region20: #{tpu_custom_call.1} parent=1 // pred_region
      %45 = dma.done [#allocation3], 16
    $region21: #{tpu_custom_call.1} parent=1 // pred_fallthru
      _
    %46 = vsyncpa [#allocation3], 1
    %47 = vsyncpa [#allocation4], 1

</llo_original>
